<compile_context>
chip_gen: v6e
topology: v6e:2x2x1
jax: 0.10.0
libtpu: 0.0.40
codegen_flags: <defaults>
</compile_context>

<pallas_src>
import functools
import math

import jax
import jax.numpy as jnp
from jax import lax
from jax.experimental import pallas as pl
from jax.experimental.pallas import tpu as pltpu


# Set to jnp.bfloat16 on v6e/v7x for 2x MXU throughput (accumulation stays f32
# via preferred_element_type). f32 default keeps exact parity with the PyTorch
# reference numerics. (v7x MXU has no int8 path; fp8 only if quantizing.)
MXU_DTYPE = jnp.float32


def _pick_tile(dim, target, align):
    """Largest tile <= target that divides `dim` and is a multiple of `align`;
    falls back to the full dim (always a legal BlockSpec block)."""
    if dim <= target:
        return dim
    t = (target // align) * align
    while t >= align:
        if dim % t == 0:
            return t
        t -= align
    return dim


def _gelu(y):
    # tanh-approx GELU in f32.
    # TODO(synk): HF BERT uses exact erf-GELU (~1e-3 activation difference).
    return 0.5 * y * (1.0 + jnp.tanh(0.7978845608028654 * (y + 0.044715 * y * y * y)))


def _layernorm(y, g, b, eps):
    mu = jnp.mean(y, axis=-1, keepdims=True)
    var = jnp.mean((y - mu) ** 2, axis=-1, keepdims=True)
    return (y - mu) * lax.rsqrt(var + eps) * g + b


# ----------------------------- Pallas kernels -------------------------------

def _linear_kernel(x_ref, w_ref, b_ref, o_ref, acc_ref, *, activation):
    @pl.when(pl.program_id(2) == 0)
    def _init():
        acc_ref[...] = jnp.zeros_like(acc_ref)

    acc_ref[...] += jnp.dot(x_ref[...].astype(MXU_DTYPE),
                            w_ref[...].astype(MXU_DTYPE),
                            preferred_element_type=jnp.float32)

    @pl.when(pl.program_id(2) == pl.num_programs(2) - 1)
    def _fini():
        y = acc_ref[...] + b_ref[...].astype(jnp.float32)
        if activation == "gelu":
            y = _gelu(y)
        o_ref[...] = y.astype(o_ref.dtype)


def pallas_linear(x, w, b, activation=None, tm=256, tn=256, tk=512):
    """y = activation(x @ w + b); x: [M,K], w: [K,N], b: [N] -> [M,N].
    Tiled over (M, N, K) with an f32 VMEM accumulator."""
    M, K = x.shape
    N = w.shape[1]
    tm = _pick_tile(M, tm, 8)
    tn = _pick_tile(N, tn, 128)
    tk = _pick_tile(K, tk, 128)
    grid = (M // tm, N // tn, K // tk)
    return pl.pallas_call(
        functools.partial(_linear_kernel, activation=activation),
        out_shape=jax.ShapeDtypeStruct((M, N), x.dtype),
        grid=grid,
        in_specs=[
            pl.BlockSpec((tm, tk), lambda i, j, k: (i, k)),
            pl.BlockSpec((tk, tn), lambda i, j, k: (k, j)),
            pl.BlockSpec((1, tn), lambda i, j, k: (0, j)),
        ],
        out_specs=pl.BlockSpec((tm, tn), lambda i, j, k: (i, j)),
        scratch_shapes=[pltpu.VMEM((tm, tn), jnp.float32)],
        compiler_params=pltpu.CompilerParams(
            dimension_semantics=("parallel", "parallel", "arbitrary")),
    )(x, w, b.reshape(1, N))


def _ln_kernel(x_ref, g_ref, b_ref, o_ref, *, eps):
    y = x_ref[...].astype(jnp.float32)
    o_ref[...] = _layernorm(y, g_ref[...], b_ref[...], eps).astype(o_ref.dtype)


def pallas_layernorm(x, gamma, beta, eps=1e-12, tm=512):
    """LayerNorm(x) over the last axis; x: [M,H] (no residual tensor)."""
    M, H = x.shape
    tm = _pick_tile(M, tm, 8)
    return pl.pallas_call(
        functools.partial(_ln_kernel, eps=eps),
        out_shape=jax.ShapeDtypeStruct((M, H), x.dtype),
        grid=(M // tm,),
        in_specs=[
            pl.BlockSpec((tm, H), lambda i: (i, 0)),
            pl.BlockSpec((1, H), lambda i: (0, 0)),
            pl.BlockSpec((1, H), lambda i: (0, 0)),
        ],
        out_specs=pl.BlockSpec((tm, H), lambda i: (i, 0)),
        compiler_params=pltpu.CompilerParams(dimension_semantics=("parallel",)),
    )(x, gamma.reshape(1, H), beta.reshape(1, H))


def _attention_kernel(qkv_ref, bias_ref, ctx_ref, probs_ref, *,
                      num_heads, head_dim, scale):
    """Per-batch attention: heads looped inside; lane-dense (S, H) ctx output."""
    H = num_heads * head_dim
    bias = bias_ref[...]                        # (1, S) additive mask in f32
    ctx_parts = []
    for h in range(num_heads):                  # small static loop over heads
        q = qkv_ref[:, h * head_dim:(h + 1) * head_dim].astype(MXU_DTYPE)
        k = qkv_ref[:, H + h * head_dim:H + (h + 1) * head_dim].astype(MXU_DTYPE)
        v = qkv_ref[:, 2 * H + h * head_dim:2 * H + (h + 1) * head_dim]
        # Contract on head_dim directly (no k.T / XLU transpose materialized).
        scores = lax.dot_general(q, k, (((1,), (1,)), ((), ())),
                                 preferred_element_type=jnp.float32)
        scores = scores * scale + bias          # BERT-style additive key mask
        m = jnp.max(scores, axis=-1, keepdims=True)
        e = jnp.exp(scores - m)
        denom = jnp.sum(e, axis=-1, keepdims=True)
        p = e * pl.reciprocal(denom, approx=True)           # EUP vrcp slot
        ctx_parts.append(jnp.dot(p.astype(MXU_DTYPE), v.astype(MXU_DTYPE),
                                 preferred_element_type=jnp.float32))
        probs_ref[h, :, :] = p.astype(probs_ref.dtype)
    # Single lane-dense (S, H) store instead of per-head 16-lane partial stores.
    ctx_ref[...] = jnp.concatenate(ctx_parts, axis=-1).astype(ctx_ref.dtype)
    # TODO(synk): for large S, tile over the KV axis (flash-style) and consider
    # bf16 probs to cut the O(S^2) HBM writeback.


def pallas_attention(qkv, mask_bias, num_heads, head_dim):
    """qkv: [B, S, 3H]; mask_bias: [B, 1, S] (additive, f32).
    Returns (context [B,S,H], probs [B,num_heads,S,S])."""
    B, S, threeH = qkv.shape
    H = num_heads * head_dim
    scale = 1.0 / math.sqrt(head_dim)           # Python float: no captured tracer
    return pl.pallas_call(
        functools.partial(_attention_kernel, num_heads=num_heads,
                          head_dim=head_dim, scale=scale),
        out_shape=(
            jax.ShapeDtypeStruct((B, S, H), qkv.dtype),
            jax.ShapeDtypeStruct((B, num_heads, S, S), jnp.float32),
        ),
        grid=(B,),
        in_specs=[
            pl.BlockSpec((None, S, threeH), lambda b: (b, 0, 0)),
            pl.BlockSpec((None, 1, S), lambda b: (b, 0, 0)),
        ],
        out_specs=(
            pl.BlockSpec((None, S, H), lambda b: (b, 0, 0)),
            pl.BlockSpec((None, num_heads, S, S), lambda b: (b, 0, 0, 0)),
        ),
        compiler_params=pltpu.CompilerParams(dimension_semantics=("parallel",)),
    )(qkv, mask_bias)


def _proj_add_ln_kernel(x_ref, w_ref, b_ref, r_ref, g_ref, bt_ref, o_ref, *, eps):
    y = jnp.dot(x_ref[...].astype(MXU_DTYPE), w_ref[...].astype(MXU_DTYPE),
                preferred_element_type=jnp.float32)
    y = y + b_ref[...].astype(jnp.float32) + r_ref[...].astype(jnp.float32)
    o_ref[...] = _layernorm(y, g_ref[...], bt_ref[...], eps).astype(o_ref.dtype)


def pallas_proj_add_layernorm(x, w, b, residual, gamma, beta, eps=1e-12, tm=256):
    """LayerNorm(x @ w + b + residual); x: [M,K], w: [K,N], residual: [M,N]."""
    M, K = x.shape
    N = w.shape[1]
    tm = _pick_tile(M, tm, 8)
    return pl.pallas_call(
        functools.partial(_proj_add_ln_kernel, eps=eps),
        out_shape=jax.ShapeDtypeStruct((M, N), x.dtype),
        grid=(M // tm,),
        in_specs=[
            pl.BlockSpec((tm, K), lambda i: (i, 0)),
            pl.BlockSpec((K, N), lambda i: (0, 0)),
            pl.BlockSpec((1, N), lambda i: (0, 0)),
            pl.BlockSpec((tm, N), lambda i: (i, 0)),
            pl.BlockSpec((1, N), lambda i: (0, 0)),
            pl.BlockSpec((1, N), lambda i: (0, 0)),
        ],
        out_specs=pl.BlockSpec((tm, N), lambda i: (i, 0)),
        compiler_params=pltpu.CompilerParams(dimension_semantics=("parallel",)),
    )(x, w, b.reshape(1, N), residual, gamma.reshape(1, N), beta.reshape(1, N))


def _ffn_add_ln_kernel(x_ref, wi_ref, bi_ref, wf_ref, bf_ref, g_ref, bt_ref,
                       o_ref, *, eps):
    x = x_ref[...]
    h = jnp.dot(x.astype(MXU_DTYPE), wi_ref[...].astype(MXU_DTYPE),
                preferred_element_type=jnp.float32) + bi_ref[...].astype(jnp.float32)
    h = _gelu(h)
    y = jnp.dot(h.astype(MXU_DTYPE), wf_ref[...].astype(MXU_DTYPE),
                preferred_element_type=jnp.float32) + bf_ref[...].astype(jnp.float32)
    y = y + x.astype(jnp.float32)
    o_ref[...] = _layernorm(y, g_ref[...], bt_ref[...], eps).astype(o_ref.dtype)


def pallas_ffn_add_layernorm(x, wi, bi, wf, bf, gamma, beta, eps=1e-12, tm=256):
    """LayerNorm(GELU(x @ wi + bi) @ wf + bf + x); x: [M,H]."""
    M, H = x.shape
    I = wi.shape[1]
    tm = _pick_tile(M, tm, 8)
    return pl.pallas_call(
        functools.partial(_ffn_add_ln_kernel, eps=eps),
        out_shape=jax.ShapeDtypeStruct((M, H), x.dtype),
        grid=(M // tm,),
        in_specs=[
            pl.BlockSpec((tm, H), lambda i: (i, 0)),
            pl.BlockSpec((H, I), lambda i: (0, 0)),
            pl.BlockSpec((1, I), lambda i: (0, 0)),
            pl.BlockSpec((I, H), lambda i: (0, 0)),
            pl.BlockSpec((1, H), lambda i: (0, 0)),
            pl.BlockSpec((1, H), lambda i: (0, 0)),
            pl.BlockSpec((1, H), lambda i: (0, 0)),
        ],
        out_specs=pl.BlockSpec((tm, H), lambda i: (i, 0)),
        compiler_params=pltpu.CompilerParams(dimension_semantics=("parallel",)),
    )(x, wi, bi.reshape(1, I), wf, bf.reshape(1, H),
      gamma.reshape(1, H), beta.reshape(1, H))


# --------------------------- Model (glue in JAX) -----------------------------

class Config:
    vocab_size = 100
    type_vocab_size = 2
    max_position_embeddings = 512
    hidden_size = 32
    num_heads = 2
    intermediate_size = 64
    num_layers = 2
    layer_norm_eps = 1e-12
    name_or_path = "bert-small-synthetic"   # not roberta -> token_types kept


def init_params(key, cfg):
    def nrm(key, shape, std=0.02):
        return std * jax.random.normal(key, shape, dtype=jnp.float32)

    keys = jax.random.split(key, 8 + 16 * cfg.num_layers)
    it = iter(keys)
    H, I = cfg.hidden_size, cfg.intermediate_size
    p = {
        "word_emb": nrm(next(it), (cfg.vocab_size, H)),
        "pos_emb": nrm(next(it), (cfg.max_position_embeddings, H)),
        "type_emb": nrm(next(it), (cfg.type_vocab_size, H)),
        "emb_ln_g": jnp.ones((H,), jnp.float32),
        "emb_ln_b": jnp.zeros((H,), jnp.float32),
        "layers": [],
    }
    for _ in range(cfg.num_layers):
        lyr = {
            "wq": nrm(next(it), (H, H)), "bq": jnp.zeros((H,), jnp.float32),
            "wk": nrm(next(it), (H, H)), "bk": jnp.zeros((H,), jnp.float32),
            "wv": nrm(next(it), (H, H)), "bv": jnp.zeros((H,), jnp.float32),
            "wo": nrm(next(it), (H, H)), "bo": jnp.zeros((H,), jnp.float32),
            "ln1_g": jnp.ones((H,), jnp.float32), "ln1_b": jnp.zeros((H,), jnp.float32),
            "wi": nrm(next(it), (H, I)), "bi": jnp.zeros((I,), jnp.float32),
            "wf": nrm(next(it), (I, H)), "bf": jnp.zeros((H,), jnp.float32),
            "ln2_g": jnp.ones((H,), jnp.float32), "ln2_b": jnp.zeros((H,), jnp.float32),
        }
        p["layers"].append(lyr)
    return p


def transformer_forward(params, cfg, token_seqs, token_masks, token_types):
    """Equivalent of Transformer.forward for batch_num_tokens <= max_num_tokens.

    Returns (batch_token_embs [B,S,H], batch_token_atts [B,heads,S,S])."""
    if "roberta" in cfg.name_or_path:
        token_types = jnp.zeros_like(token_types)

    B, S = token_seqs.shape
    H = cfg.hidden_size
    nh = cfg.num_heads
    dh = H // nh

    # --- embeddings (gather is glue) + LayerNorm-only Pallas kernel ---
    emb = (params["word_emb"][token_seqs]
           + params["pos_emb"][:S][None, :, :]
           + params["type_emb"][token_types])
    x2d = pallas_layernorm(emb.reshape(B * S, H), params["emb_ln_g"],
                           params["emb_ln_b"], cfg.layer_norm_eps)

    # Additive attention mask precomputed once (not per (b,h) grid cell).
    mask_bias = ((1.0 - token_masks.astype(jnp.float32)) * -10000.0).reshape(B, 1, S)

    last_probs = None
    for lyr in params["layers"]:
        # Fused QKV projection: one [H, 3H] tiled matmul instead of three.
        w_qkv = jnp.concatenate([lyr["wq"], lyr["wk"], lyr["wv"]], axis=1)
        b_qkv = jnp.concatenate([lyr["bq"], lyr["bk"], lyr["bv"]], axis=0)
        qkv = pallas_linear(x2d, w_qkv, b_qkv).reshape(B, S, 3 * H)

        # Attention: grid over batch, heads looped inside, lane-dense ctx.
        ctx, probs = pallas_attention(qkv, mask_bias, nh, dh)
        last_probs = probs

        # Fused (attn-out projection + residual + LayerNorm1).
        x2d = pallas_proj_add_layernorm(ctx.reshape(B * S, H), lyr["wo"], lyr["bo"],
                                        x2d, lyr["ln1_g"], lyr["ln1_b"],
                                        cfg.layer_norm_eps)
        # Fused (wi + GELU + wf + residual + LayerNorm2).
        x2d = pallas_ffn_add_layernorm(x2d, lyr["wi"], lyr["bi"],
                                       lyr["wf"], lyr["bf"],
                                       lyr["ln2_g"], lyr["ln2_b"],
                                       cfg.layer_norm_eps)

    batch_token_embs = x2d.reshape(B, S, H)
    batch_token_atts = last_probs
    return batch_token_embs, batch_token_atts


# --------------------------------- main --------------------------------------

if __name__ == "__main__":
    cfg = Config()
    key = jax.random.PRNGKey(0)
    pkey, skey, tkey = jax.random.split(key, 3)

    params = init_params(pkey, cfg)

    B, S = 2, 8  # batch_num_tokens (=8) <= max_num_tokens (512) -> simple branch
    batch_token_seqs = jax.random.randint(skey, (B, S), 0, cfg.vocab_size,
                                          dtype=jnp.int32)
    batch_token_masks = jnp.ones((B, S), dtype=jnp.float32)
    batch_token_types = jax.random.randint(tkey, (B, S), 0, cfg.type_vocab_size,
                                           dtype=jnp.int32)

    embs, atts = transformer_forward(params, cfg, batch_token_seqs,
                                     batch_token_masks, batch_token_types)
    jax.block_until_ready((embs, atts))

    assert embs.shape == (B, S, cfg.hidden_size)
    assert atts.shape == (B, cfg.num_heads, S, S)
    print("KERNEL_OK")
</pallas_src>

<mosaic_0001>
module attributes {stable_mosaic.version = 11 : i64} {
  func.func @_ln_kernel(%arg0: i32, %arg1: memref<16x32xf32, #tpu.memory_space<vmem>>, %arg2: memref<1x32xf32, #tpu.memory_space<vmem>>, %arg3: memref<1x32xf32, #tpu.memory_space<vmem>>, %arg4: memref<16x32xf32, #tpu.memory_space<vmem>>) attributes {dimension_semantics = [#tpu.dimension_semantics<parallel>], iteration_bounds = array<i64: 1>, scalar_prefetch = 0 : i64, scratch_operands = 0 : i64, tpu.core_type = #tpu.core_type<tc>, window_params = [{transform_indices = @transform_0, window_bounds = array<i64: 16, 32>}, {pipeline_mode = #tpu.pipeline_mode<synchronous>, transform_indices = @transform_1, window_bounds = array<i64: 1, 32>}, {pipeline_mode = #tpu.pipeline_mode<synchronous>, transform_indices = @transform_2, window_bounds = array<i64: 1, 32>}, {transform_indices = @transform_3, window_bounds = array<i64: 16, 32>}]} {
    %c0 = arith.constant 0 : index
    %c0_0 = arith.constant 0 : index
    %0 = vector.load %arg1[%c0, %c0_0] : memref<16x32xf32, #tpu.memory_space<vmem>>, vector<16x32xf32>
    %c0_1 = arith.constant 0 : index
    %c0_2 = arith.constant 0 : index
    %1 = vector.load %arg2[%c0_1, %c0_2] : memref<1x32xf32, #tpu.memory_space<vmem>>, vector<1x32xf32>
    %c0_3 = arith.constant 0 : index
    %c0_4 = arith.constant 0 : index
    %2 = vector.load %arg3[%c0_3, %c0_4] : memref<1x32xf32, #tpu.memory_space<vmem>>, vector<1x32xf32>
    %cst = arith.constant dense<0.000000e+00> : vector<16xf32>
    %3 = vector.multi_reduction <add>, %0, %cst [1] : vector<16x32xf32> to vector<16xf32>
    %4 = vector.shape_cast %3 : vector<16xf32> to vector<16x1xf32>
    %cst_5 = arith.constant 3.200000e+01 : f32
    %5 = vector.broadcast %cst_5 : f32 to vector<16x1xf32>
    %6 = arith.divf %4, %5 : vector<16x1xf32>
    %7 = vector.broadcast %6 : vector<16x1xf32> to vector<16x32xf32>
    %8 = arith.subf %0, %7 : vector<16x32xf32>
    %9 = arith.mulf %8, %8 : vector<16x32xf32>
    %cst_6 = arith.constant dense<0.000000e+00> : vector<16xf32>
    %10 = vector.multi_reduction <add>, %9, %cst_6 [1] : vector<16x32xf32> to vector<16xf32>
    %11 = vector.shape_cast %10 : vector<16xf32> to vector<16x1xf32>
    %cst_7 = arith.constant 3.200000e+01 : f32
    %12 = vector.broadcast %cst_7 : f32 to vector<16x1xf32>
    %13 = arith.divf %11, %12 : vector<16x1xf32>
    %14 = vector.broadcast %6 : vector<16x1xf32> to vector<16x32xf32>
    %15 = arith.subf %0, %14 : vector<16x32xf32>
    %cst_8 = arith.constant 9.99999996E-13 : f32
    %16 = vector.broadcast %cst_8 : f32 to vector<16x1xf32>
    %17 = arith.addf %13, %16 : vector<16x1xf32>
    %18 = math.rsqrt %17 : vector<16x1xf32>
    %19 = vector.broadcast %18 : vector<16x1xf32> to vector<16x32xf32>
    %20 = arith.mulf %15, %19 : vector<16x32xf32>
    %21 = vector.broadcast %1 : vector<1x32xf32> to vector<16x32xf32>
    %22 = arith.mulf %20, %21 : vector<16x32xf32>
    %23 = vector.broadcast %2 : vector<1x32xf32> to vector<16x32xf32>
    %24 = arith.addf %22, %23 : vector<16x32xf32>
    %c0_9 = arith.constant 0 : index
    %c0_10 = arith.constant 0 : index
    %25 = vector.load %arg4[%c0_9, %c0_10] : memref<16x32xf32, #tpu.memory_space<vmem>>, vector<16x32xf32>
    tpu.vector_store %arg4[%c0_9, %c0_10], %24 {strides = array<i32>} : memref<16x32xf32, #tpu.memory_space<vmem>>, vector<16x32xf32>,
    return
  }
  func.func @transform_0(%arg0: i32) -> (i32, i32) {
    %c0_i32 = arith.constant 0 : i32
    %c0_i32_0 = arith.constant 0 : i32
    return %arg0, %c0_i32 : i32, i32
  }
  func.func @transform_1(%arg0: i32) -> (i32, i32) {
    %c0_i32 = arith.constant 0 : i32
    %c0_i32_0 = arith.constant 0 : i32
    %c0_i32_1 = arith.constant 0 : i32
    return %c0_i32, %c0_i32_0 : i32, i32
  }
  func.func @transform_2(%arg0: i32) -> (i32, i32) {
    %c0_i32 = arith.constant 0 : i32
    %c0_i32_0 = arith.constant 0 : i32
    %c0_i32_1 = arith.constant 0 : i32
    return %c0_i32, %c0_i32_0 : i32, i32
  }
  func.func @transform_3(%arg0: i32) -> (i32, i32) {
    %c0_i32 = arith.constant 0 : i32
    %c0_i32_0 = arith.constant 0 : i32
    return %arg0, %c0_i32 : i32, i32
  }
}

</mosaic_0001>

<llo_original>
// kernel: tpu_custom_call.1
$region0: #{tpu_custom_call.1}
  #allocation0 [shape = 'u32[]', space=smem, size = 0x4, offset = 0x4, fixed_abs, tag = 'smem constant byte address 0x4 - core index']
  #allocation1 [shape = 'u32[144,128]{1,0:T(1,128)}', space=vmem, size = 0x12000, scoped, tag = 'internal scratch']
  %s0 = inlined_call_operand.hbm [shape: f32[16,32], index: 0, kind: input, shape index: {}]
  %s1 = inlined_call_operand.vmem [shape: f32[1,32], index: 1, kind: input, shape index: {}]
  %s2 = inlined_call_operand.vmem [shape: f32[1,32], index: 2, kind: input, shape index: {}]
  %s3 = inlined_call_operand.hbm [shape: f32[16,32], index: 3, kind: output, shape index: {}]
  %s4 = sld [smem:[#allocation0]]
  $region26: #{tpu_custom_call.1} parent=0
    _
  %s6 = ssub.s32 1, %s4
  %s7 = scalar_select 0, %s6, %s4
  $region1: #{tpu_custom_call.1} parent=0
    #allocation2 [shape = 'u8[8192]{0}', space=vmem, size = 0x2000, scoped, tag = 'input window, operand 0, single buffered']
    #allocation3 [shape = 's32[1]{0}', space=sflag, size = 0x4, scoped, tag = 'scoped memory for tpu_custom_call.1']
    #allocation4 [shape = 's32[1]{0}', space=sflag, size = 0x4, scoped, tag = 'scoped memory for tpu_custom_call.1']
    #allocation5 [shape = 'u8[8192]{0}', space=vmem, size = 0x2000, scoped, tag = 'output window, operand 0, single buffered']
    %8 = vsyncpa [#allocation3], 0
    %9 = vsyncpa [#allocation4], 0
    // Predicated region
    $region2: #{tpu_custom_call.1} parent=1 // pred_check
      _
    $region3: #{tpu_custom_call.1} parent=1 // pred_check_branch
      %11 = sbr.rel (0) target = $region5
    $region4: #{tpu_custom_call.1} parent=1 // pred_region
      %s13 = ssub.s32 256, 256
      %14 = vsyncadd [#allocation3], %s13
      %s15 = sshll.u32 [#allocation2], 4
      %s16 = int_to_ptr.vmem [resolvable:$true] %s15
      %21 = dma.hbm_to_vmem [thread:$0]  %s0, 256, %s16, [#allocation3], 128, 128, 8
    $region5: #{tpu_custom_call.1} parent=1 // pred_fallthru
      _
    // Predicated region
    $region6: #{tpu_custom_call.1} parent=1 // pred_check
      _
    $region7: #{tpu_custom_call.1} parent=1 // pred_check_branch
      %23 = sbr.rel (0) target = $region9
    $region8: #{tpu_custom_call.1} parent=1 // pred_region
      _
    $region9: #{tpu_custom_call.1} parent=1 // pred_fallthru
      _
    // Predicated region
    $region10: #{tpu_custom_call.1} parent=1 // pred_check
      _
    $region11: #{tpu_custom_call.1} parent=1 // pred_check_branch
      %25 = sbr.rel (0) target = $region13
    $region12: #{tpu_custom_call.1} parent=1 // pred_region
      _
    $region13: #{tpu_custom_call.1} parent=1 // pred_fallthru
      _
    // Predicated region
    $region14: #{tpu_custom_call.1} parent=1 // pred_check
      _
    $region15: #{tpu_custom_call.1} parent=1 // pred_check_branch
      %27 = sbr.rel (0) target = $region17
    $region16: #{tpu_custom_call.1} parent=1 // pred_region
      %28 = dma.done [#allocation3], 256
    $region17: #{tpu_custom_call.1} parent=1 // pred_fallthru
      _
    %v29 = vld [vmem:[#allocation2] sm:$0xff]
    %v30 = vld [vmem:[#allocation2 + $0x8] sm:$0xff]
    %v31 = vld [vmem:[%s1] sm:$0x1]
    %v32 = vld [vmem:[%s2] sm:$0x1]
    %vm33 = vcmask 261120
    %v34 = vsel %vm33, %v29, 0.0
    %35 = vadd.xlane.f32.xlu0 %v34
    %v36 = vpop.xlane.xlu0 %35
    %v37 = vsel %vm33, %v30, 0.0
    %38 = vadd.xlane.f32.xlu0 %v37
    %v39 = vpop.xlane.xlu0 %38
    %v40 = vrcp.pop 32.0
    %v41 = vmul.f32 %v36, %v40
    %v42 = vmul.f32 %v39, %v40
    %v43 = vsub.f32 %v29, %v41
    %v44 = vsub.f32 %v30, %v42
    %v45 = vmul.f32 %v43, %v43
    %v46 = vmul.f32 %v44, %v44
    %v47 = vsel %vm33, %v45, 0.0
    %48 = vadd.xlane.f32.xlu0 %v47
    %v49 = vpop.xlane.xlu0 %48
    %v50 = vsel %vm33, %v46, 0.0
    %51 = vadd.xlane.f32.xlu0 %v50
    %v52 = vpop.xlane.xlu0 %51
    %v53 = vmul.f32 %v49, %v40
    %v54 = vmul.f32 %v52, %v40
    %v55 = vadd.f32 %v53, 1e-12
    %v56 = vadd.f32 %v54, 1e-12
    %v57 = vrsqrt.pop %v55
    %v58 = vrsqrt.pop %v56
    %v59 = vmul.f32 %v43, %v57
    %v60 = vmul.f32 %v44, %v58
    %v62 = vlaneseq
    %v63 = vshrl.u32 %v62, 7
    %v64 = vsub.s32 0, %v63
    %v65 = vrot.slane %v31, %v64
    %v67 = vmul.f32 %v59, %v65
    %v68 = vmul.f32 %v60, %v65
    %v70 = vlaneseq
    %v71 = vshrl.u32 %v70, 7
    %v72 = vsub.s32 0, %v71
    %v73 = vrot.slane %v32, %v72
    %v75 = vadd.f32 %v67, %v73
    %v76 = vadd.f32 %v68, %v73
    %77 = vst.msk [vmem:[#allocation5] sm:$0xff] %vm33, %v75
    %78 = vst.msk [vmem:[#allocation5 + $0x8] sm:$0xff] %vm33, %v76
    // Predicated region
    $region18: #{tpu_custom_call.1} parent=1 // pred_check
      _
    $region19: #{tpu_custom_call.1} parent=1 // pred_check_branch
      %80 = sbr.rel (0) target = $region21
    $region20: #{tpu_custom_call.1} parent=1 // pred_region
      %s82 = ssub.s32 256, 256
      %83 = vsyncadd [#allocation4], %s82
      %s84 = sshll.u32 [#allocation5], 4
      %s85 = int_to_ptr.vmem [resolvable:$true] %s84
      %90 = dma.vmem_to_hbm [thread:$0]  %s85, 256, %s3, [#allocation4], 128, 128, 8
    $region21: #{tpu_custom_call.1} parent=1 // pred_fallthru
      _
    // Predicated region
    $region22: #{tpu_custom_call.1} parent=1 // pred_check
      _
    $region23: #{tpu_custom_call.1} parent=1 // pred_check_branch
      %92 = sbr.rel (0) target = $region25
    $region24: #{tpu_custom_call.1} parent=1 // pred_region
      %93 = dma.done [#allocation4], 256
    $region25: #{tpu_custom_call.1} parent=1 // pred_fallthru
      _
    %94 = vsyncpa [#allocation3], 1
    %95 = vsyncpa [#allocation4], 1

</llo_original>
